<compile_context>
chip_gen: v5e
topology: v5e:2x2
jax: 0.10.0
libtpu: 0.0.40
codegen_flags: <defaults>
</compile_context>

<pallas_src>
import jax
import jax.numpy as jnp
from jax import lax
from jax.experimental import pallas as pl
from jax.experimental.pallas import tpu as pltpu

# ---- loss hyper-parameters (deterministic, stand-in for @configurable cfg) ----
CLASSIFICATION_LAMBDA = 2.0
USE_FOCAL = True
FOCAL_ALPHA = 0.25
FOCAL_GAMMA = 2.0          # fixed; the modulator is an explicit square below
USE_GIOU = True
GIOU_LAMBDA = 1.0
PROJECTION_LAMBDA = 5.0
NULL_CLASS = False          # no-op in the reference forward as well
BIG = 1e8

# TODO(synk): the use_focal=False (softmax cross-entropy) branch of the module
# is not implemented here; this configuration (like the reference run) uses focal.


def _loss_kernel(gtaug_ref, gtrow_ref, prop_ref, pred_ref, logits_ref, out_ref):
    # gtaug_ref:  (NB, 8, G)  rows x1,y1,x2,y2, mask, not_empty, class, 0 (G on lanes)
    # gtrow_ref:  (NB, G, 8)  cols x1,y1,x2,y2, mask, 0, 0, 0          (G on sublanes)
    # prop_ref:   (NB, 4, TA) proposal boxes, coordinate-major (A on lanes)
    # pred_ref:   (NB, 4, TA) predicted boxes, coordinate-major
    # logits_ref: (NB, C, TA) class logits, class-major (A on lanes)
    # out_ref:    (NB, 3, TA) row0=classification, row1=projection, row2=giou
    gt_aug = gtaug_ref[...]
    gt_rows = gtrow_ref[...]
    prop = prop_ref[...]
    pred = pred_ref[...]
    logits = logits_ref[...]

    nb = gt_aug.shape[0]
    g = gt_aug.shape[2]
    ta = prop.shape[2]
    c = logits.shape[1]

    # ---- proposal-vs-gt L1 distance matrix, (G sublanes, A lanes) ----
    d = jnp.abs(gt_rows[:, :, 0:1] - prop[:, 0:1, :])
    for k in range(1, 4):
        d = d + jnp.abs(gt_rows[:, :, k:k + 1] - prop[:, k:k + 1, :])
    d = jnp.where(gt_rows[:, :, 4:5] > 0.5, d, BIG)                    # (NB, G, TA)

    # first-argmin over G (torch .min index semantics), all in f32
    g_idx = lax.broadcasted_iota(jnp.int32, (nb, g, ta), 1).astype(jnp.float32)
    min_val = jnp.min(d, axis=1, keepdims=True)                        # (NB, 1, TA)
    closest = jnp.min(jnp.where(d == min_val, g_idx, float(g)),
                      axis=1, keepdims=True)                           # (NB, 1, TA)
    sel = (g_idx == closest).astype(jnp.float32)                       # (NB, G, TA)

    # ---- gather-then-compute: single small (8,G)@(G,TA) one-hot MXU matmul ----
    # Rows: 0..3 closest-gt coords, 4 mask, 5 not_empty, 6 class index.
    gathered = jnp.einsum('nkg,nga->nka', gt_aug, sel,
                          precision=lax.Precision.HIGHEST,
                          preferred_element_type=jnp.float32)          # (NB, 8, TA)

    px1 = pred[:, 0, :]; py1 = pred[:, 1, :]
    px2 = pred[:, 2, :]; py2 = pred[:, 3, :]
    gx1 = gathered[:, 0, :]; gy1 = gathered[:, 1, :]
    gx2 = gathered[:, 2, :]; gy2 = gathered[:, 3, :]
    gmask = gathered[:, 4, :] > 0.5                                    # (NB, TA)
    gne = gathered[:, 5, :] > 0.5                                      # (NB, TA)
    gcls = gathered[:, 6, :]                                           # (NB, TA)

    # ---- projection loss: L1(pred, gt[closest]) gated by the gathered mask ----
    proj = (jnp.abs(px1 - gx1) + jnp.abs(py1 - gy1) +
            jnp.abs(px2 - gx2) + jnp.abs(py2 - gy2))
    proj_loss = jnp.where(gmask, proj, 0.0) * PROJECTION_LAMBDA

    # ---- generalized IoU on the gathered boxes only (no eps, as in torch) ----
    area_p = (px2 - px1) * (py2 - py1)
    area_g = (gx2 - gx1) * (gy2 - gy1)
    iw = jnp.maximum(jnp.minimum(px2, gx2) - jnp.maximum(px1, gx1), 0.0)
    ih = jnp.maximum(jnp.minimum(py2, gy2) - jnp.maximum(py1, gy1), 0.0)
    inter = iw * ih
    union = area_p + area_g - inter
    ew = jnp.maximum(jnp.maximum(px2, gx2) - jnp.minimum(px1, gx1), 0.0)
    eh = jnp.maximum(jnp.maximum(py2, gy2) - jnp.minimum(py1, gy1), 0.0)
    earea = ew * eh
    # guard the divides where the gathered gt is invalid (result is overwritten
    # by BIG anyway; behaviour with a valid gt is unchanged / reference-exact)
    iou = inter / jnp.where(gmask, union, 1.0)
    giou = iou - (earea - union) / jnp.where(gmask, earea, 1.0)
    giou_loss = jnp.where(gmask, giou, BIG) * GIOU_LAMBDA

    # ---- classification: sigmoid focal loss, lane-dense (C on sublanes) ----
    c_idx = lax.broadcasted_iota(jnp.int32, (nb, c, ta), 1).astype(jnp.float32)
    onehot = (jnp.abs(c_idx - gcls[:, None, :]) < 0.5).astype(jnp.float32)
    x = logits
    e = jnp.exp(-jnp.abs(x))                        # shared by softplus & sigmoid
    bce = jnp.maximum(x, 0.0) + jnp.log(1.0 + e) - onehot * x   # stable BCE-with-logits
    one_p_e = 1.0 + e
    r = pl.reciprocal(one_p_e, approx=True)         # EUP vrcp instead of a 3rd exp
    r = r * (2.0 - one_p_e * r)                     # one Newton step -> ~f32 accurate
    sig = jnp.where(x >= 0.0, r, 1.0 - r)           # sigmoid(x)
    one_m_pt = onehot + (1.0 - 2.0 * onehot) * sig  # 1 - p_t
    alpha_t = (1.0 - FOCAL_ALPHA) + (2.0 * FOCAL_ALPHA - 1.0) * onehot
    cls_loss = jnp.mean(alpha_t * bce * one_m_pt * one_m_pt, axis=1)   # (NB, TA)
    cls_loss = jnp.where(gne, cls_loss, 0.0) * CLASSIFICATION_LAMBDA

    # single fused lane-dense store
    out_ref[...] = jnp.concatenate(
        [cls_loss[:, None, :], proj_loss[:, None, :], giou_loss[:, None, :]],
        axis=1)


# ----------------------- block / VMEM-budget selection -----------------------
def _round_up(v, m):
    return (v + m - 1) // m * m


def _vmem_estimate(nb, ta, g, c):
    """Conservative f32 VMEM bytes for one grid step (I/O double-buffered)."""
    la = _round_up(ta, 128)
    lg = _round_up(g, 128)
    sg = _round_up(g, 8)
    sc = _round_up(c, 8)
    io = (8 * lg          # gt payload (8, G)
          + sg * 128      # gt rows (G, 8 -> 128 lanes)
          + 8 * la        # proposals (4 -> 8, TA)
          + 8 * la        # predictions
          + sc * la       # logits
          + 8 * la)       # fused output (3 -> 8, TA)
    live = (4 * sg * la   # d / iota / sel / masked copies
            + 4 * sc * la # focal-loss temporaries
            + 4 * 8 * la) # gathered payload + per-loss rows
    return 4 * nb * (2 * io + live)


def _pick_a_tile(a, max_ta=1024):
    """Largest multiple-of-128 divisor of A that is <= max_ta (else full A)."""
    if a <= max_ta or a % 128 != 0:
        return a
    best = 128
    for t in range(256, max_ta + 1, 128):
        if a % t == 0:
            best = t
    return best


def _pick_batch_block(n, a, g, c, ta, budget_bytes=28 * 2 ** 20, max_nb=32):
    """Largest divisor of N within the VMEM budget that keeps >= 2 grid steps."""
    grid_a = a // ta
    total_steps = n * grid_a
    best = 1
    for nb in range(1, min(max_nb, n) + 1):
        if n % nb:
            continue
        if (n // nb) * grid_a < min(2, total_steps):
            continue   # keep both TensorCores busy when possible
        if _vmem_estimate(nb, ta, g, c) <= budget_bytes:
            best = nb
    return best


@jax.jit
def detection_losses(gt_not_empty, gt_padded, gt_mask, gt_classes,
                     prop_boxes, pred_boxes, class_logits):
    N, G, _ = gt_padded.shape
    _, A, C = class_logits.shape
    f32 = jnp.float32

    # gt payload, coordinate-major (G on lanes):
    #   rows x1, y1, x2, y2, mask, not_empty, class, pad
    coords_t = jnp.swapaxes(gt_padded.astype(f32), 1, 2)                 # (N,4,G)
    mask_row = gt_mask.reshape(N, 1, G).astype(f32)
    ne_row = jnp.broadcast_to(
        gt_not_empty.reshape(N, 1, 1).astype(f32), (N, 1, G))
    cls_row = gt_classes.reshape(N, 1, G).astype(f32)
    gt_aug_t = jnp.concatenate(
        [coords_t, mask_row, ne_row, cls_row, jnp.zeros((N, 1, G), f32)],
        axis=1)                                                          # (N,8,G)

    # gt payload, box-major (G on sublanes): x1, y1, x2, y2, mask, pad*3
    gt_rows = jnp.concatenate(
        [gt_padded.astype(f32), gt_mask.reshape(N, G, 1).astype(f32),
         jnp.zeros((N, G, 3), f32)], axis=-1)                            # (N,G,8)

    prop_t = jnp.swapaxes(prop_boxes.astype(f32), 1, 2)                  # (N,4,A)
    pred_t = jnp.swapaxes(pred_boxes.astype(f32), 1, 2)                  # (N,4,A)
    logits_t = jnp.swapaxes(class_logits.astype(f32), 1, 2)              # (N,C,A)

    ta = _pick_a_tile(A)
    nb = _pick_batch_block(N, A, G, C, ta)
    assert N % nb == 0 and A % ta == 0, (N, nb, A, ta)

    fused = pl.pallas_call(
        _loss_kernel,
        out_shape=jax.ShapeDtypeStruct((N, 3, A), f32),
        grid_spec=pltpu.PrefetchScalarGridSpec(
            num_scalar_prefetch=0,
            grid=(N // nb, A // ta),
            in_specs=[
                pl.BlockSpec((nb, 8, G), lambda i, j: (i, 0, 0)),    # gt (8,G)
                pl.BlockSpec((nb, G, 8), lambda i, j: (i, 0, 0)),    # gt (G,8)
                pl.BlockSpec((nb, 4, ta), lambda i, j: (i, 0, j)),   # proposals
                pl.BlockSpec((nb, 4, ta), lambda i, j: (i, 0, j)),   # predictions
                pl.BlockSpec((nb, C, ta), lambda i, j: (i, 0, j)),   # logits (C,A)
            ],
            out_specs=pl.BlockSpec((nb, 3, ta), lambda i, j: (i, 0, j)),
        ),
        compiler_params=pltpu.CompilerParams(
            dimension_semantics=("parallel", "parallel"),
            vmem_limit_bytes=48 * 1024 * 1024),
    )(gt_aug_t, gt_rows, prop_t, pred_t, logits_t)

    return fused[:, 0, :], fused[:, 1, :], fused[:, 2, :]


# ------------------------------ pure-JAX reference ------------------------------
def reference(gt_not_empty, gt_padded, gt_mask, gt_classes,
              prop_boxes, pred_boxes, class_logits):
    N, G, _ = gt_padded.shape
    _, A, C = class_logits.shape
    valid = jnp.broadcast_to(gt_mask[:, None, :] > 0.5, (N, A, G))

    def l1(b):
        return jnp.abs(b[:, :, None, :] - gt_padded[:, None, :, :]).sum(-1)

    dp = jnp.where(valid, l1(prop_boxes), BIG)
    closest = jnp.argmin(dp, axis=-1)                                     # (N, A)
    dq = jnp.where(valid, l1(pred_boxes), BIG)
    proj = jnp.take_along_axis(dq, closest[..., None], axis=-1)[..., 0]
    mask_g = jnp.take_along_axis(
        jnp.broadcast_to(gt_mask[:, None, :], (N, A, G)).astype(jnp.float32),
        closest[..., None], axis=-1)[..., 0]
    proj = jnp.where(mask_g > 0.5, proj, 0.0) * PROJECTION_LAMBDA

    # generalized IoU
    p = pred_boxes[:, :, None, :]
    g = gt_padded[:, None, :, :]
    area_p = (p[..., 2] - p[..., 0]) * (p[..., 3] - p[..., 1])
    area_g = (g[..., 2] - g[..., 0]) * (g[..., 3] - g[..., 1])
    lt = jnp.maximum(p[..., :2], g[..., :2]); rb = jnp.minimum(p[..., 2:], g[..., 2:])
    wh = jnp.maximum(rb - lt, 0.0); inter = wh[..., 0] * wh[..., 1]
    union = area_p + area_g - inter
    iou = inter / union
    lte = jnp.minimum(p[..., :2], g[..., :2]); rbe = jnp.maximum(p[..., 2:], g[..., 2:])
    whe = jnp.maximum(rbe - lte, 0.0); earea = whe[..., 0] * whe[..., 1]
    giou = iou - (earea - union) / earea
    giou = jnp.where(valid, giou, BIG)
    giou_l = jnp.take_along_axis(giou, closest[..., None], axis=-1)[..., 0] * GIOU_LAMBDA

    # focal classification loss (torchvision sigmoid_focal_loss form)
    tgt = jnp.take_along_axis(gt_classes, closest, axis=-1)               # (N, A)
    onehot = jax.nn.one_hot(tgt, C, dtype=jnp.float32)
    x = class_logits
    prob = jax.nn.sigmoid(x)
    sp_pos = jnp.maximum(x, 0.0) + jnp.log1p(jnp.exp(-jnp.abs(x)))
    sp_neg = sp_pos - x
    bce = onehot * sp_neg + (1.0 - onehot) * sp_pos
    p_t = prob * onehot + (1.0 - prob) * (1.0 - onehot)
    focal = bce * (1.0 - p_t) * (1.0 - p_t)
    alpha_t = FOCAL_ALPHA * onehot + (1.0 - FOCAL_ALPHA) * (1.0 - onehot)
    cls_loss = jnp.mean(alpha_t * focal, axis=-1)
    cls_loss = jnp.where((gt_not_empty > 0)[:, None], cls_loss, 0.0) * CLASSIFICATION_LAMBDA
    return cls_loss, proj, giou_l


if __name__ == "__main__":
    N, A, G, C = 2, 16, 8, 32            # batch, proposals, max gt boxes, classes
    gt_counts = jnp.array([8, 5], dtype=jnp.int32)

    key = jax.random.PRNGKey(0)
    k1, k2, k3, k4, k5, k6, k7 = jax.random.split(key, 7)

    def make_boxes(ka, kb, shape):
        xy = jax.random.uniform(ka, shape + (2,), minval=0.0, maxval=50.0)
        wh = jax.random.uniform(kb, shape + (2,), minval=1.0, maxval=30.0)
        return jnp.concatenate([xy, xy + wh], axis=-1).astype(jnp.float32)

    gt_mask = (jnp.arange(G)[None, :] < gt_counts[:, None]).astype(jnp.float32)
    gt_padded = make_boxes(k1, k2, (N, G)) * gt_mask[..., None]          # zero-pad invalid rows
    gt_classes = jax.random.randint(k3, (N, G), 0, C, dtype=jnp.int32)
    prop_boxes = make_boxes(k4, k5, (N, A))
    pred_boxes = make_boxes(k6, k7, (N, A))
    class_logits = jax.random.normal(jax.random.PRNGKey(1), (N, A, C), dtype=jnp.float32)
    gt_not_empty = (gt_counts > 0).astype(jnp.int32)

    cls_l, proj_l, giou_l = detection_losses(
        gt_not_empty, gt_padded, gt_mask, gt_classes,
        prop_boxes, pred_boxes, class_logits)
    jax.block_until_ready((cls_l, proj_l, giou_l))

    cls_r, proj_r, giou_r = reference(
        gt_not_empty, gt_padded, gt_mask, gt_classes,
        prop_boxes, pred_boxes, class_logits)

    assert jnp.allclose(cls_l, cls_r, rtol=5e-4, atol=1e-4), (cls_l, cls_r)
    assert jnp.allclose(proj_l, proj_r, rtol=1e-4, atol=2e-3), (proj_l, proj_r)
    assert jnp.allclose(giou_l, giou_r, rtol=1e-4, atol=5e-4), (giou_l, giou_r)
    assert bool(jnp.isfinite(cls_l).all() & jnp.isfinite(proj_l).all()
                & jnp.isfinite(giou_l).all())

    print("KERNEL_OK")
</pallas_src>

<mosaic_0001>
module attributes {stable_mosaic.version = 11 : i64} {
  func.func @_loss_kernel(%arg0: i32, %arg1: i32, %arg2: memref<1x8x8xf32, #tpu.memory_space<vmem>>, %arg3: memref<1x8x8xf32, #tpu.memory_space<vmem>>, %arg4: memref<1x4x16xf32, #tpu.memory_space<vmem>>, %arg5: memref<1x4x16xf32, #tpu.memory_space<vmem>>, %arg6: memref<1x32x16xf32, #tpu.memory_space<vmem>>, %arg7: memref<1x3x16xf32, #tpu.memory_space<vmem>>) attributes {dimension_semantics = [#tpu.dimension_semantics<parallel>, #tpu.dimension_semantics<parallel>], iteration_bounds = array<i64: 2, 1>, scalar_prefetch = 0 : i64, scratch_operands = 0 : i64, tpu.core_type = #tpu.core_type<tc>, window_params = [{transform_indices = @transform_0, window_bounds = array<i64: 1, 8, 8>}, {transform_indices = @transform_1, window_bounds = array<i64: 1, 8, 8>}, {transform_indices = @transform_2, window_bounds = array<i64: 1, 4, 16>}, {transform_indices = @transform_3, window_bounds = array<i64: 1, 4, 16>}, {transform_indices = @transform_4, window_bounds = array<i64: 1, 32, 16>}, {transform_indices = @transform_5, window_bounds = array<i64: 1, 3, 16>}]} {
    %c0 = arith.constant 0 : index
    %c0_0 = arith.constant 0 : index
    %c0_1 = arith.constant 0 : index
    %0 = vector.load %arg2[%c0, %c0_0, %c0_1] : memref<1x8x8xf32, #tpu.memory_space<vmem>>, vector<1x8x8xf32>
    %c0_2 = arith.constant 0 : index
    %c0_3 = arith.constant 0 : index
    %c0_4 = arith.constant 0 : index
    %1 = vector.load %arg3[%c0_2, %c0_3, %c0_4] : memref<1x8x8xf32, #tpu.memory_space<vmem>>, vector<1x8x8xf32>
    %c0_5 = arith.constant 0 : index
    %c0_6 = arith.constant 0 : index
    %c0_7 = arith.constant 0 : index
    %2 = vector.load %arg4[%c0_5, %c0_6, %c0_7] : memref<1x4x16xf32, #tpu.memory_space<vmem>>, vector<1x4x16xf32>
    %c0_8 = arith.constant 0 : index
    %c0_9 = arith.constant 0 : index
    %c0_10 = arith.constant 0 : index
    %3 = vector.load %arg5[%c0_8, %c0_9, %c0_10] : memref<1x4x16xf32, #tpu.memory_space<vmem>>, vector<1x4x16xf32>
    %c0_11 = arith.constant 0 : index
    %c0_12 = arith.constant 0 : index
    %c0_13 = arith.constant 0 : index
    %4 = vector.load %arg6[%c0_11, %c0_12, %c0_13] : memref<1x32x16xf32, #tpu.memory_space<vmem>>, vector<1x32x16xf32>
    %5 = vector.extract_strided_slice %1 {offsets = [0, 0, 0], sizes = [1, 8, 1], strides = [1, 1, 1]} : vector<1x8x8xf32> to vector<1x8x1xf32>
    %6 = vector.extract_strided_slice %2 {offsets = [0, 0, 0], sizes = [1, 1, 16], strides = [1, 1, 1]} : vector<1x4x16xf32> to vector<1x1x16xf32>
    %7 = vector.broadcast %5 : vector<1x8x1xf32> to vector<1x8x16xf32>
    %8 = vector.broadcast %6 : vector<1x1x16xf32> to vector<1x8x16xf32>
    %9 = arith.subf %7, %8 : vector<1x8x16xf32>
    %10 = math.absf %9 : vector<1x8x16xf32>
    %11 = vector.extract_strided_slice %1 {offsets = [0, 0, 1], sizes = [1, 8, 1], strides = [1, 1, 1]} : vector<1x8x8xf32> to vector<1x8x1xf32>
    %12 = vector.extract_strided_slice %2 {offsets = [0, 1, 0], sizes = [1, 1, 16], strides = [1, 1, 1]} : vector<1x4x16xf32> to vector<1x1x16xf32>
    %13 = vector.broadcast %11 : vector<1x8x1xf32> to vector<1x8x16xf32>
    %14 = vector.broadcast %12 : vector<1x1x16xf32> to vector<1x8x16xf32>
    %15 = arith.subf %13, %14 : vector<1x8x16xf32>
    %16 = math.absf %15 : vector<1x8x16xf32>
    %17 = arith.addf %10, %16 : vector<1x8x16xf32>
    %18 = vector.extract_strided_slice %1 {offsets = [0, 0, 2], sizes = [1, 8, 1], strides = [1, 1, 1]} : vector<1x8x8xf32> to vector<1x8x1xf32>
    %19 = vector.extract_strided_slice %2 {offsets = [0, 2, 0], sizes = [1, 1, 16], strides = [1, 1, 1]} : vector<1x4x16xf32> to vector<1x1x16xf32>
    %20 = vector.broadcast %18 : vector<1x8x1xf32> to vector<1x8x16xf32>
    %21 = vector.broadcast %19 : vector<1x1x16xf32> to vector<1x8x16xf32>
    %22 = arith.subf %20, %21 : vector<1x8x16xf32>
    %23 = math.absf %22 : vector<1x8x16xf32>
    %24 = arith.addf %17, %23 : vector<1x8x16xf32>
    %25 = vector.extract_strided_slice %1 {offsets = [0, 0, 3], sizes = [1, 8, 1], strides = [1, 1, 1]} : vector<1x8x8xf32> to vector<1x8x1xf32>
    %26 = vector.extract_strided_slice %2 {offsets = [0, 3, 0], sizes = [1, 1, 16], strides = [1, 1, 1]} : vector<1x4x16xf32> to vector<1x1x16xf32>
    %27 = vector.broadcast %25 : vector<1x8x1xf32> to vector<1x8x16xf32>
    %28 = vector.broadcast %26 : vector<1x1x16xf32> to vector<1x8x16xf32>
    %29 = arith.subf %27, %28 : vector<1x8x16xf32>
    %30 = math.absf %29 : vector<1x8x16xf32>
    %31 = arith.addf %24, %30 : vector<1x8x16xf32>
    %32 = vector.extract_strided_slice %1 {offsets = [0, 0, 4], sizes = [1, 8, 1], strides = [1, 1, 1]} : vector<1x8x8xf32> to vector<1x8x1xf32>
    %cst = arith.constant 5.000000e-01 : f32
    %33 = vector.broadcast %cst : f32 to vector<1x8x1xf32>
    %34 = arith.cmpf ogt, %32, %33 : vector<1x8x1xf32>
    %cst_14 = arith.constant 1.000000e+08 : f32
    %35 = vector.shape_cast %34 : vector<1x8x1xi1> to vector<1x8x1xi1>
    %36 = vector.broadcast %35 : vector<1x8x1xi1> to vector<1x8x16xi1>
    %37 = vector.broadcast %cst_14 : f32 to vector<1x8x16xf32>
    %38 = arith.select %36, %31, %37 : vector<1x8x16xi1>, vector<1x8x16xf32>
    %39 = tpu.iota {dimensions = array<i32: 1>} : vector<1x8x16xi32>
    %40 = arith.sitofp %39 : vector<1x8x16xi32> to vector<1x8x16xf32>
    %cst_15 = arith.constant dense<0x7F800000> : vector<1x16xf32>
    %41 = vector.multi_reduction <minimumf>, %38, %cst_15 [1] : vector<1x8x16xf32> to vector<1x16xf32>
    %42 = vector.shape_cast %41 : vector<1x16xf32> to vector<1x1x16xf32>
    %43 = vector.broadcast %42 : vector<1x1x16xf32> to vector<1x8x16xf32>
    %44 = arith.cmpf oeq, %38, %43 : vector<1x8x16xf32>
    %cst_16 = arith.constant 8.000000e+00 : f32
    %45 = vector.broadcast %cst_16 : f32 to vector<1x8x16xf32>
    %46 = arith.select %44, %40, %45 : vector<1x8x16xi1>, vector<1x8x16xf32>
    %cst_17 = arith.constant dense<0x7F800000> : vector<1x16xf32>
    %47 = vector.multi_reduction <minimumf>, %46, %cst_17 [1] : vector<1x8x16xf32> to vector<1x16xf32>
    %48 = vector.shape_cast %47 : vector<1x16xf32> to vector<1x1x16xf32>
    %49 = vector.broadcast %48 : vector<1x1x16xf32> to vector<1x8x16xf32>
    %50 = arith.cmpf oeq, %40, %49 : vector<1x8x16xf32>
    %51 = arith.extui %50 : vector<1x8x16xi1> to vector<1x8x16xi32>
    %52 = arith.sitofp %51 : vector<1x8x16xi32> to vector<1x8x16xf32>
    "tpu.trace_start"() <{level = 10 : i32, message = "nkg,nga->nka"}> : () -> ()
    %cst_18 = arith.constant dense<0.000000e+00> : vector<1x8x16xf32>
    %53 = tpu.matmul %0, %52, %cst_18 {dimension_numbers = #tpu.dot_dimension_numbers<[2], [1], [1], [2], [0, 0, 0, 1, 1, 2], [0], [0]>, precision = #tpu.contract_precision<fp32>} : vector<1x8x8xf32>, vector<1x8x16xf32>, vector<1x8x16xf32> -> vector<1x8x16xf32>
    "tpu.trace_stop"() : () -> ()
    %54 = vector.extract_strided_slice %3 {offsets = [0, 0, 0], sizes = [1, 1, 16], strides = [1, 1, 1]} : vector<1x4x16xf32> to vector<1x1x16xf32>
    %55 = vector.shape_cast %54 : vector<1x1x16xf32> to vector<1x16xf32>
    %56 = vector.extract_strided_slice %3 {offsets = [0, 1, 0], sizes = [1, 1, 16], strides = [1, 1, 1]} : vector<1x4x16xf32> to vector<1x1x16xf32>
    %57 = vector.shape_cast %56 : vector<1x1x16xf32> to vector<1x16xf32>
    %58 = vector.extract_strided_slice %3 {offsets = [0, 2, 0], sizes = [1, 1, 16], strides = [1, 1, 1]} : vector<1x4x16xf32> to vector<1x1x16xf32>
    %59 = vector.shape_cast %58 : vector<1x1x16xf32> to vector<1x16xf32>
    %60 = vector.extract_strided_slice %3 {offsets = [0, 3, 0], sizes = [1, 1, 16], strides = [1, 1, 1]} : vector<1x4x16xf32> to vector<1x1x16xf32>
    %61 = vector.shape_cast %60 : vector<1x1x16xf32> to vector<1x16xf32>
    %62 = vector.extract_strided_slice %53 {offsets = [0, 0, 0], sizes = [1, 1, 16], strides = [1, 1, 1]} : vector<1x8x16xf32> to vector<1x1x16xf32>
    %63 = vector.shape_cast %62 : vector<1x1x16xf32> to vector<1x16xf32>
    %64 = vector.extract_strided_slice %53 {offsets = [0, 1, 0], sizes = [1, 1, 16], strides = [1, 1, 1]} : vector<1x8x16xf32> to vector<1x1x16xf32>
    %65 = vector.shape_cast %64 : vector<1x1x16xf32> to vector<1x16xf32>
    %66 = vector.extract_strided_slice %53 {offsets = [0, 2, 0], sizes = [1, 1, 16], strides = [1, 1, 1]} : vector<1x8x16xf32> to vector<1x1x16xf32>
    %67 = vector.shape_cast %66 : vector<1x1x16xf32> to vector<1x16xf32>
    %68 = vector.extract_strided_slice %53 {offsets = [0, 3, 0], sizes = [1, 1, 16], strides = [1, 1, 1]} : vector<1x8x16xf32> to vector<1x1x16xf32>
    %69 = vector.shape_cast %68 : vector<1x1x16xf32> to vector<1x16xf32>
    %70 = vector.extract_strided_slice %53 {offsets = [0, 4, 0], sizes = [1, 1, 16], strides = [1, 1, 1]} : vector<1x8x16xf32> to vector<1x1x16xf32>
    %71 = vector.shape_cast %70 : vector<1x1x16xf32> to vector<1x16xf32>
    %cst_19 = arith.constant 5.000000e-01 : f32
    %72 = vector.broadcast %cst_19 : f32 to vector<1x16xf32>
    %73 = arith.cmpf ogt, %71, %72 : vector<1x16xf32>
    %74 = vector.extract_strided_slice %53 {offsets = [0, 5, 0], sizes = [1, 1, 16], strides = [1, 1, 1]} : vector<1x8x16xf32> to vector<1x1x16xf32>
    %75 = vector.shape_cast %74 : vector<1x1x16xf32> to vector<1x16xf32>
    %cst_20 = arith.constant 5.000000e-01 : f32
    %76 = vector.broadcast %cst_20 : f32 to vector<1x16xf32>
    %77 = arith.cmpf ogt, %75, %76 : vector<1x16xf32>
    %78 = vector.extract_strided_slice %53 {offsets = [0, 6, 0], sizes = [1, 1, 16], strides = [1, 1, 1]} : vector<1x8x16xf32> to vector<1x1x16xf32>
    %79 = vector.shape_cast %78 : vector<1x1x16xf32> to vector<1x16xf32>
    %80 = arith.subf %55, %63 : vector<1x16xf32>
    %81 = math.absf %80 : vector<1x16xf32>
    %82 = arith.subf %57, %65 : vector<1x16xf32>
    %83 = math.absf %82 : vector<1x16xf32>
    %84 = arith.addf %81, %83 : vector<1x16xf32>
    %85 = arith.subf %59, %67 : vector<1x16xf32>
    %86 = math.absf %85 : vector<1x16xf32>
    %87 = arith.addf %84, %86 : vector<1x16xf32>
    %88 = arith.subf %61, %69 : vector<1x16xf32>
    %89 = math.absf %88 : vector<1x16xf32>
    %90 = arith.addf %87, %89 : vector<1x16xf32>
    %cst_21 = arith.constant 0.000000e+00 : f32
    %91 = vector.broadcast %cst_21 : f32 to vector<1x16xf32>
    %92 = arith.select %73, %90, %91 : vector<1x16xi1>, vector<1x16xf32>
    %cst_22 = arith.constant 5.000000e+00 : f32
    %93 = vector.broadcast %cst_22 : f32 to vector<1x16xf32>
    %94 = arith.mulf %92, %93 : vector<1x16xf32>
    %95 = arith.subf %59, %55 : vector<1x16xf32>
    %96 = arith.subf %61, %57 : vector<1x16xf32>
    %97 = arith.mulf %95, %96 : vector<1x16xf32>
    %98 = arith.subf %67, %63 : vector<1x16xf32>
    %99 = arith.subf %69, %65 : vector<1x16xf32>
    %100 = arith.mulf %98, %99 : vector<1x16xf32>
    %101 = arith.minimumf %59, %67 : vector<1x16xf32>
    %102 = arith.maximumf %55, %63 : vector<1x16xf32>
    %103 = arith.subf %101, %102 : vector<1x16xf32>
    %cst_23 = arith.constant 0.000000e+00 : f32
    %104 = vector.broadcast %cst_23 : f32 to vector<1x16xf32>
    %105 = arith.maximumf %103, %104 : vector<1x16xf32>
    %106 = arith.minimumf %61, %69 : vector<1x16xf32>
    %107 = arith.maximumf %57, %65 : vector<1x16xf32>
    %108 = arith.subf %106, %107 : vector<1x16xf32>
    %cst_24 = arith.constant 0.000000e+00 : f32
    %109 = vector.broadcast %cst_24 : f32 to vector<1x16xf32>
    %110 = arith.maximumf %108, %109 : vector<1x16xf32>
    %111 = arith.mulf %105, %110 : vector<1x16xf32>
    %112 = arith.addf %97, %100 : vector<1x16xf32>
    %113 = arith.subf %112, %111 : vector<1x16xf32>
    %114 = arith.maximumf %59, %67 : vector<1x16xf32>
    %115 = arith.minimumf %55, %63 : vector<1x16xf32>
    %116 = arith.subf %114, %115 : vector<1x16xf32>
    %cst_25 = arith.constant 0.000000e+00 : f32
    %117 = vector.broadcast %cst_25 : f32 to vector<1x16xf32>
    %118 = arith.maximumf %116, %117 : vector<1x16xf32>
    %119 = arith.maximumf %61, %69 : vector<1x16xf32>
    %120 = arith.minimumf %57, %65 : vector<1x16xf32>
    %121 = arith.subf %119, %120 : vector<1x16xf32>
    %cst_26 = arith.constant 0.000000e+00 : f32
    %122 = vector.broadcast %cst_26 : f32 to vector<1x16xf32>
    %123 = arith.maximumf %121, %122 : vector<1x16xf32>
    %124 = arith.mulf %118, %123 : vector<1x16xf32>
    %cst_27 = arith.constant 1.000000e+00 : f32
    %125 = vector.broadcast %cst_27 : f32 to vector<1x16xf32>
    %126 = arith.select %73, %113, %125 : vector<1x16xi1>, vector<1x16xf32>
    %127 = arith.divf %111, %126 : vector<1x16xf32>
    %128 = arith.subf %124, %113 : vector<1x16xf32>
    %cst_28 = arith.constant 1.000000e+00 : f32
    %129 = vector.broadcast %cst_28 : f32 to vector<1x16xf32>
    %130 = arith.select %73, %124, %129 : vector<1x16xi1>, vector<1x16xf32>
    %131 = arith.divf %128, %130 : vector<1x16xf32>
    %132 = arith.subf %127, %131 : vector<1x16xf32>
    %cst_29 = arith.constant 1.000000e+08 : f32
    %133 = vector.broadcast %cst_29 : f32 to vector<1x16xf32>
    %134 = arith.select %73, %132, %133 : vector<1x16xi1>, vector<1x16xf32>
    %cst_30 = arith.constant 1.000000e+00 : f32
    %135 = vector.broadcast %cst_30 : f32 to vector<1x16xf32>
    %136 = arith.mulf %134, %135 : vector<1x16xf32>
    %137 = tpu.iota {dimensions = array<i32: 1>} : vector<1x32x16xi32>
    %138 = arith.sitofp %137 : vector<1x32x16xi32> to vector<1x32x16xf32>
    %139 = vector.shape_cast %79 : vector<1x16xf32> to vector<1x1x16xf32>
    %140 = vector.broadcast %139 : vector<1x1x16xf32> to vector<1x32x16xf32>
    %141 = arith.subf %138, %140 : vector<1x32x16xf32>
    %142 = math.absf %141 : vector<1x32x16xf32>
    %cst_31 = arith.constant 5.000000e-01 : f32
    %143 = vector.broadcast %cst_31 : f32 to vector<1x32x16xf32>
    %144 = arith.cmpf olt, %142, %143 : vector<1x32x16xf32>
    %145 = arith.extui %144 : vector<1x32x16xi1> to vector<1x32x16xi32>
    %146 = arith.sitofp %145 : vector<1x32x16xi32> to vector<1x32x16xf32>
    %147 = math.absf %4 : vector<1x32x16xf32>
    %cst_32 = arith.constant 0.000000e+00 : f32
    %148 = vector.broadcast %cst_32 : f32 to vector<1x32x16xf32>
    %149 = arith.subf %148, %147 : vector<1x32x16xf32>
    %150 = math.exp %149 : vector<1x32x16xf32>
    %cst_33 = arith.constant 0.000000e+00 : f32
    %151 = vector.broadcast %cst_33 : f32 to vector<1x32x16xf32>
    %152 = arith.maximumf %4, %151 : vector<1x32x16xf32>
    %cst_34 = arith.constant 1.000000e+00 : f32
    %153 = vector.broadcast %cst_34 : f32 to vector<1x32x16xf32>
    %154 = arith.addf %153, %150 : vector<1x32x16xf32>
    %155 = math.log %154 : vector<1x32x16xf32>
    %156 = arith.addf %152, %155 : vector<1x32x16xf32>
    %157 = arith.mulf %146, %4 : vector<1x32x16xf32>
    %158 = arith.subf %156, %157 : vector<1x32x16xf32>
    %cst_35 = arith.constant 1.000000e+00 : f32
    %159 = vector.broadcast %cst_35 : f32 to vector<1x32x16xf32>
    %160 = arith.addf %159, %150 : vector<1x32x16xf32>
    %161 = tpu.reciprocal %160 {approx = true} : vector<1x32x16xf32> -> vector<1x32x16xf32>
    %162 = arith.mulf %160, %161 : vector<1x32x16xf32>
    %cst_36 = arith.constant 2.000000e+00 : f32
    %163 = vector.broadcast %cst_36 : f32 to vector<1x32x16xf32>
    %164 = arith.subf %163, %162 : vector<1x32x16xf32>
    %165 = arith.mulf %161, %164 : vector<1x32x16xf32>
    %cst_37 = arith.constant 0.000000e+00 : f32
    %166 = vector.broadcast %cst_37 : f32 to vector<1x32x16xf32>
    %167 = arith.cmpf oge, %4, %166 : vector<1x32x16xf32>
    %cst_38 = arith.constant 1.000000e+00 : f32
    %168 = vector.broadcast %cst_38 : f32 to vector<1x32x16xf32>
    %169 = arith.subf %168, %165 : vector<1x32x16xf32>
    %170 = arith.select %167, %165, %169 : vector<1x32x16xi1>, vector<1x32x16xf32>
    %cst_39 = arith.constant 2.000000e+00 : f32
    %171 = vector.broadcast %cst_39 : f32 to vector<1x32x16xf32>
    %172 = arith.mulf %171, %146 : vector<1x32x16xf32>
    %cst_40 = arith.constant 1.000000e+00 : f32
    %173 = vector.broadcast %cst_40 : f32 to vector<1x32x16xf32>
    %174 = arith.subf %173, %172 : vector<1x32x16xf32>
    %175 = arith.mulf %174, %170 : vector<1x32x16xf32>
    %176 = arith.addf %146, %175 : vector<1x32x16xf32>
    %cst_41 = arith.constant -5.000000e-01 : f32
    %177 = vector.broadcast %cst_41 : f32 to vector<1x32x16xf32>
    %178 = arith.mulf %177, %146 : vector<1x32x16xf32>
    %cst_42 = arith.constant 7.500000e-01 : f32
    %179 = vector.broadcast %cst_42 : f32 to vector<1x32x16xf32>
    %180 = arith.addf %179, %178 : vector<1x32x16xf32>
    %181 = arith.mulf %180, %158 : vector<1x32x16xf32>
    %182 = arith.mulf %181, %176 : vector<1x32x16xf32>
    %183 = arith.mulf %182, %176 : vector<1x32x16xf32>
    %cst_43 = arith.constant dense<0.000000e+00> : vector<1x16xf32>
    %184 = vector.multi_reduction <add>, %183, %cst_43 [1] : vector<1x32x16xf32> to vector<1x16xf32>
    %cst_44 = arith.constant 3.200000e+01 : f32
    %185 = vector.broadcast %cst_44 : f32 to vector<1x16xf32>
    %186 = arith.divf %184, %185 : vector<1x16xf32>
    %cst_45 = arith.constant 0.000000e+00 : f32
    %187 = vector.broadcast %cst_45 : f32 to vector<1x16xf32>
    %188 = arith.select %77, %186, %187 : vector<1x16xi1>, vector<1x16xf32>
    %cst_46 = arith.constant 2.000000e+00 : f32
    %189 = vector.broadcast %cst_46 : f32 to vector<1x16xf32>
    %190 = arith.mulf %188, %189 : vector<1x16xf32>
    %191 = vector.shape_cast %190 : vector<1x16xf32> to vector<1x1x16xf32>
    %192 = vector.shape_cast %94 : vector<1x16xf32> to vector<1x1x16xf32>
    %193 = vector.shape_cast %136 : vector<1x16xf32> to vector<1x1x16xf32>
    %194 = tpu.concatenate %191, %192, %193 in 1 : vector<1x1x16xf32>, vector<1x1x16xf32>, vector<1x1x16xf32> -> vector<1x3x16xf32>
    %c0_47 = arith.constant 0 : index
    %c0_48 = arith.constant 0 : index
    %c0_49 = arith.constant 0 : index
    %195 = vector.load %arg7[%c0_47, %c0_48, %c0_49] : memref<1x3x16xf32, #tpu.memory_space<vmem>>, vector<1x3x16xf32>
    tpu.vector_store %arg7[%c0_47, %c0_48, %c0_49], %194 {strides = array<i32>} : memref<1x3x16xf32, #tpu.memory_space<vmem>>, vector<1x3x16xf32>,
    return
  }
  func.func @transform_0(%arg0: i32, %arg1: i32) -> (i32, i32, i32) {
    %c0_i32 = arith.constant 0 : i32
    %c0_i32_0 = arith.constant 0 : i32
    %c0_i32_1 = arith.constant 0 : i32
    return %arg0, %c0_i32, %c0_i32_0 : i32, i32, i32
  }
  func.func @transform_1(%arg0: i32, %arg1: i32) -> (i32, i32, i32) {
    %c0_i32 = arith.constant 0 : i32
    %c0_i32_0 = arith.constant 0 : i32
    %c0_i32_1 = arith.constant 0 : i32
    return %arg0, %c0_i32, %c0_i32_0 : i32, i32, i32
  }
  func.func @transform_2(%arg0: i32, %arg1: i32) -> (i32, i32, i32) {
    %c0_i32 = arith.constant 0 : i32
    %c0_i32_0 = arith.constant 0 : i32
    return %arg0, %c0_i32, %arg1 : i32, i32, i32
  }
  func.func @transform_3(%arg0: i32, %arg1: i32) -> (i32, i32, i32) {
    %c0_i32 = arith.constant 0 : i32
    %c0_i32_0 = arith.constant 0 : i32
    return %arg0, %c0_i32, %arg1 : i32, i32, i32
  }
  func.func @transform_4(%arg0: i32, %arg1: i32) -> (i32, i32, i32) {
    %c0_i32 = arith.constant 0 : i32
    %c0_i32_0 = arith.constant 0 : i32
    return %arg0, %c0_i32, %arg1 : i32, i32, i32
  }
  func.func @transform_5(%arg0: i32, %arg1: i32) -> (i32, i32, i32) {
    %c0_i32 = arith.constant 0 : i32
    %c0_i32_0 = arith.constant 0 : i32
    return %arg0, %c0_i32, %arg1 : i32, i32, i32
  }
}

</mosaic_0001>

<llo_original>
// kernel: detection_losses.1
$region0: #{detection_losses.1}
  #allocation0 [shape = 'u32[]', space=smem, size = 0x4, offset = 0x4, fixed_abs, tag = 'smem constant byte address 0x4 - core index']
  #allocation1 [shape = 'u32[72,128]{1,0:T(1,128)}', space=vmem, size = 0x9000, scoped, tag = 'internal scratch']
  %s0 = inlined_call_operand.vmem [shape: f32[2,8,8], index: 0, kind: input, shape index: {}]
  %s1 = inlined_call_operand.vmem [shape: f32[2,8,8], index: 1, kind: input, shape index: {}]
  %s2 = inlined_call_operand.vmem [shape: f32[2,4,16], index: 2, kind: input, shape index: {}]
  %s3 = inlined_call_operand.vmem [shape: f32[2,4,16], index: 3, kind: input, shape index: {}]
  %s4 = inlined_call_operand.vmem [shape: f32[2,32,16], index: 4, kind: input, shape index: {}]
  %s5 = inlined_call_operand.vmem [shape: f32[2,3,16], index: 5, kind: output, shape index: {}]
  %s6 = sld [smem:[#allocation0]]
  $region53: #{detection_losses.1} parent=0
    _
  %s8 = ssub.s32 1, %s6
  %s9 = scalar_select 0, %s8, %s6
  loop: start=0, step=1, limit=4
  $region2: #{detection_losses.1} parent=0 // loop_pre_header
    _
  $region3: #{detection_losses.1} parent=0 // loop_header
    %s11 = sphi 0, %s15
    %p12 = scmp.ge.s32.totalorder %s11, 4
    %s18 = sphi 0, %s30
    %s19 = sphi 0, %s26
    %s20 = sphi 0, %s18
    %s21 = sphi 0, %s19
    %s22 = sphi 0, %s20
    %s23 = sphi 0, %s21
    %s33 = sphi 0, %s35
    %s36 = sphi 0, %s33
    %s37 = sphi 0, %s36
    %s53 = sphi 0, %s37
    %s59 = sphi 0, %s61
    %s62 = sphi 0, %s59
    %s63 = sphi 0, %s62
    %s79 = sphi 0, %s63
    %s87 = sphi 0, %s89
    %s90 = sphi 0, %s87
    %s91 = sphi 0, %s90
    %s107 = sphi 0, %s91
    %s115 = sphi 0, %s117
    %s118 = sphi 0, %s115
    %s119 = sphi 0, %s118
    %s135 = sphi 0, %s119
    %s143 = sphi 0, %s145
    %s146 = sphi 0, %s143
    %s147 = sphi 0, %s146
    %s163 = sphi 0, %s147
    %s171 = sphi 0, %s173
    %s174 = sphi 0, %s171
    %s175 = sphi 0, %s174
    %s191 = sphi 0, %s175
  $region4: #{detection_losses.1} parent=0 // loop_header_branch
    %14 = sbr.rel (%p12) target = $region8
  $region5: #{detection_losses.1} parent=0 // loop_body
    %s16 = ssub.s32 %s11, 1
    %s17 = ssub.s32 %s11, 2
    %s24 = sadd.s32 1, %s19
    %p25 = scmp.ge.s32.totalorder %s24, 1
    %s26 = scalar_select %p25, 0, %s24
    %s27 = sadd.s32 1, %s18
    %s28 = scalar_select %p25, %s27, %s18
    %p29 = scmp.ge.s32.totalorder %s28, 2
    %s30 = scalar_select %p29, 0, %s28
    %s31 = ssub.s32 %s18, %s30
    %p32 = scmp.eq.s32.totalorder %s31, 0
    %s34 = sadd.s32 %s33, 1
    %s35 = scalar_select %p32, %s33, %s34
    %p38 = pneg %p32
    %p39 = scmp.eq.s32.totalorder %s11, 1
    %p40 = por %p38, %p39
    %p41 = scmp.ne.s32.totalorder %s33, %s36
    %p42 = scmp.eq.s32.totalorder %s11, 0
    %p43 = por %p41, %p42
    %p44 = scmp.ne.s32.totalorder %s33, %s36
    %p45 = scmp.eq.s32.totalorder %s16, 1
    %p46 = por %p44, %p45
    %p47 = scmp.ne.s32.totalorder %s36, %s37
    %p48 = scmp.eq.s32.totalorder %s16, 0
    %p49 = por %p47, %p48
    %p50 = scmp.ne.s32.totalorder %s36, %s37
    %p51 = scmp.eq.s32.totalorder %s17, 1
    %p52 = por %p50, %p51
    %p54 = scmp.ne.s32.totalorder %s37, %s53
    %p55 = scmp.eq.s32.totalorder %s17, 0
    %p56 = por %p54, %p55
    %s57 = ssub.s32 %s18, %s30
    %p58 = scmp.eq.s32.totalorder %s57, 0
    %s60 = sadd.s32 %s59, 1
    %s61 = scalar_select %p58, %s59, %s60
    %p64 = pneg %p58
    %p65 = scmp.eq.s32.totalorder %s11, 1
    %p66 = por %p64, %p65
    %p67 = scmp.ne.s32.totalorder %s59, %s62
    %p68 = scmp.eq.s32.totalorder %s11, 0
    %p69 = por %p67, %p68
    %p70 = scmp.ne.s32.totalorder %s59, %s62
    %p71 = scmp.eq.s32.totalorder %s16, 1
    %p72 = por %p70, %p71
    %p73 = scmp.ne.s32.totalorder %s62, %s63
    %p74 = scmp.eq.s32.totalorder %s16, 0
    %p75 = por %p73, %p74
    %p76 = scmp.ne.s32.totalorder %s62, %s63
    %p77 = scmp.eq.s32.totalorder %s17, 1
    %p78 = por %p76, %p77
    %p80 = scmp.ne.s32.totalorder %s63, %s79
    %p81 = scmp.eq.s32.totalorder %s17, 0
    %p82 = por %p80, %p81
    %s83 = ssub.s32 %s18, %s30
    %s84 = ssub.s32 %s19, %s26
    %s85 = sor.u32 %s83, %s84
    %p86 = scmp.eq.s32.totalorder %s85, 0
    %s88 = sadd.s32 %s87, 1
    %s89 = scalar_select %p86, %s87, %s88
    %p92 = pneg %p86
    %p93 = scmp.eq.s32.totalorder %s11, 1
    %p94 = por %p92, %p93
    %p95 = scmp.ne.s32.totalorder %s87, %s90
    %p96 = scmp.eq.s32.totalorder %s11, 0
    %p97 = por %p95, %p96
    %p98 = scmp.ne.s32.totalorder %s87, %s90
    %p99 = scmp.eq.s32.totalorder %s16, 1
    %p100 = por %p98, %p99
    %p101 = scmp.ne.s32.totalorder %s90, %s91
    %p102 = scmp.eq.s32.totalorder %s16, 0
    %p103 = por %p101, %p102
    %p104 = scmp.ne.s32.totalorder %s90, %s91
    %p105 = scmp.eq.s32.totalorder %s17, 1
    %p106 = por %p104, %p105
    %p108 = scmp.ne.s32.totalorder %s91, %s107
    %p109 = scmp.eq.s32.totalorder %s17, 0
    %p110 = por %p108, %p109
    %s111 = ssub.s32 %s18, %s30
    %s112 = ssub.s32 %s19, %s26
    %s113 = sor.u32 %s111, %s112
    %p114 = scmp.eq.s32.totalorder %s113, 0
    %s116 = sadd.s32 %s115, 1
    %s117 = scalar_select %p114, %s115, %s116
    %p120 = pneg %p114
    %p121 = scmp.eq.s32.totalorder %s11, 1
    %p122 = por %p120, %p121
    %p123 = scmp.ne.s32.totalorder %s115, %s118
    %p124 = scmp.eq.s32.totalorder %s11, 0
    %p125 = por %p123, %p124
    %p126 = scmp.ne.s32.totalorder %s115, %s118
    %p127 = scmp.eq.s32.totalorder %s16, 1
    %p128 = por %p126, %p127
    %p129 = scmp.ne.s32.totalorder %s118, %s119
    %p130 = scmp.eq.s32.totalorder %s16, 0
    %p131 = por %p129, %p130
    %p132 = scmp.ne.s32.totalorder %s118, %s119
    %p133 = scmp.eq.s32.totalorder %s17, 1
    %p134 = por %p132, %p133
    %p136 = scmp.ne.s32.totalorder %s119, %s135
    %p137 = scmp.eq.s32.totalorder %s17, 0
    %p138 = por %p136, %p137
    %s139 = ssub.s32 %s18, %s30
    %s140 = ssub.s32 %s19, %s26
    %s141 = sor.u32 %s139, %s140
    %p142 = scmp.eq.s32.totalorder %s141, 0
    %s144 = sadd.s32 %s143, 1
    %s145 = scalar_select %p142, %s143, %s144
    %p148 = pneg %p142
    %p149 = scmp.eq.s32.totalorder %s11, 1
    %p150 = por %p148, %p149
    %p151 = scmp.ne.s32.totalorder %s143, %s146
    %p152 = scmp.eq.s32.totalorder %s11, 0
    %p153 = por %p151, %p152
    %p154 = scmp.ne.s32.totalorder %s143, %s146
    %p155 = scmp.eq.s32.totalorder %s16, 1
    %p156 = por %p154, %p155
    %p157 = scmp.ne.s32.totalorder %s146, %s147
    %p158 = scmp.eq.s32.totalorder %s16, 0
    %p159 = por %p157, %p158
    %p160 = scmp.ne.s32.totalorder %s146, %s147
    %p161 = scmp.eq.s32.totalorder %s17, 1
    %p162 = por %p160, %p161
    %p164 = scmp.ne.s32.totalorder %s147, %s163
    %p165 = scmp.eq.s32.totalorder %s17, 0
    %p166 = por %p164, %p165
    %s167 = ssub.s32 %s18, %s30
    %s168 = ssub.s32 %s19, %s26
    %s169 = sor.u32 %s167, %s168
    %p170 = scmp.eq.s32.totalorder %s169, 0
    %s172 = sadd.s32 %s171, 1
    %s173 = scalar_select %p170, %s171, %s172
    %p176 = pneg %p170
    %p177 = scmp.eq.s32.totalorder %s11, 1
    %p178 = por %p176, %p177
    %p179 = scmp.ne.s32.totalorder %s171, %s174
    %p180 = scmp.eq.s32.totalorder %s11, 0
    %p181 = por %p179, %p180
    %p182 = scmp.ne.s32.totalorder %s171, %s174
    %p183 = scmp.eq.s32.totalorder %s16, 1
    %p184 = por %p182, %p183
    %p185 = scmp.ne.s32.totalorder %s174, %s175
    %p186 = scmp.eq.s32.totalorder %s16, 0
    %p187 = por %p185, %p186
    %p188 = scmp.ne.s32.totalorder %s174, %s175
    %p189 = scmp.eq.s32.totalorder %s17, 1
    %p190 = por %p188, %p189
    %p192 = scmp.ne.s32.totalorder %s175, %s191
    %p193 = scmp.eq.s32.totalorder %s17, 0
    %p194 = por %p192, %p193
    %p195 = scmp.le.s32.totalorder 1, %s11
    %p196 = scmp.lt.s32.totalorder %s11, 3
    %p197 = pnand %p195, %p196
    %p198 = pneg %p197
    // Predicated region
    $region9: #{detection_losses.1} parent=5 // pred_check
      _
    $region10: #{detection_losses.1} parent=5 // pred_check_branch
      %200 = sbr.rel (%p197) target = $region12
    $region11: #{detection_losses.1} parent=5 // pred_region
      %s201 = ssub.s32 %s11, 1
    $region12: #{detection_losses.1} parent=5 // pred_fallthru
      _
    %p202 = scmp.lt.s32.totalorder %s11, 2
    // Predicated region
    $region13: #{detection_losses.1} parent=5 // pred_check
      %p203 = pneg %p202
    $region14: #{detection_losses.1} parent=5 // pred_check_branch
      %205 = sbr.rel (%p203) target = $region16
    $region15: #{detection_losses.1} parent=5 // pred_region
      // Predicated region
      $region17: #{detection_losses.1} parent=15 // pred_check
        %p206 = pneg %p43
      $region18: #{detection_losses.1} parent=15 // pred_check_branch
        %208 = sbr.rel (%p206) target = $region20
      $region19: #{detection_losses.1} parent=15 // pred_region
        %p209 = scmp.lt.s32.totalorder %s18, 1
        %s210 = scalar_select %p209, %s18, 1
        %s211 = smul.addr %s210, 8
        %s212 = scalar_lea.vmem %s0, %s211
      $region20: #{detection_losses.1} parent=15 // pred_fallthru
        _
      // Predicated region
      $region21: #{detection_losses.1} parent=15 // pred_check
        %p213 = pneg %p69
      $region22: #{detection_losses.1} parent=15 // pred_check_branch
        %215 = sbr.rel (%p213) target = $region24
      $region23: #{detection_losses.1} parent=15 // pred_region
        %p216 = scmp.lt.s32.totalorder %s18, 1
        %s217 = scalar_select %p216, %s18, 1
        %s218 = smul.addr %s217, 8
        %s219 = scalar_lea.vmem %s1, %s218
      $region24: #{detection_losses.1} parent=15 // pred_fallthru
        _
      // Predicated region
      $region25: #{detection_losses.1} parent=15 // pred_check
        %p220 = pneg %p97
      $region26: #{detection_losses.1} parent=15 // pred_check_branch
        %222 = sbr.rel (%p220) target = $region28
      $region27: #{detection_losses.1} parent=15 // pred_region
        %p223 = scmp.lt.s32.totalorder %s18, 1
        %s224 = scalar_select %p223, %s18, 1
        %p225 = scmp.lt.s32.totalorder %s19, 0
        %s226 = scalar_select %p225, %s19, 0
        %s227 = sadd.s32 %s226, %s224
        %s228 = smul.addr %s227, 4
        %s229 = scalar_lea.vmem %s2, %s228
      $region28: #{detection_losses.1} parent=15 // pred_fallthru
        _
      // Predicated region
      $region29: #{detection_losses.1} parent=15 // pred_check
        %p230 = pneg %p125
      $region30: #{detection_losses.1} parent=15 // pred_check_branch
        %232 = sbr.rel (%p230) target = $region32
      $region31: #{detection_losses.1} parent=15 // pred_region
        %p233 = scmp.lt.s32.totalorder %s18, 1
        %s234 = scalar_select %p233, %s18, 1
        %p235 = scmp.lt.s32.totalorder %s19, 0
        %s236 = scalar_select %p235, %s19, 0
        %s237 = sadd.s32 %s236, %s234
        %s238 = smul.addr %s237, 4
        %s239 = scalar_lea.vmem %s3, %s238
      $region32: #{detection_losses.1} parent=15 // pred_fallthru
        _
      // Predicated region
      $region33: #{detection_losses.1} parent=15 // pred_check
        %p240 = pneg %p153
      $region34: #{detection_losses.1} parent=15 // pred_check_branch
        %242 = sbr.rel (%p240) target = $region36
      $region35: #{detection_losses.1} parent=15 // pred_region
        %p243 = scmp.lt.s32.totalorder %s18, 1
        %s244 = scalar_select %p243, %s18, 1
        %p245 = scmp.lt.s32.totalorder %s19, 0
        %s246 = scalar_select %p245, %s19, 0
        %s247 = smul.addr %s244, 4
        %s248 = sadd.s32 %s246, %s247
        %s249 = smul.addr %s248, 8
        %s250 = scalar_lea.vmem %s4, %s249
      $region36: #{detection_losses.1} parent=15 // pred_fallthru
        _
    $region16: #{detection_losses.1} parent=5 // pred_fallthru
      _
    %p251 = scmp.le.s32.totalorder 1, %s11
    %p252 = scmp.lt.s32.totalorder %s11, 3
    %p253 = pnand %p251, %p252
    %p254 = pneg %p253
    // Predicated region
    $region37: #{detection_losses.1} parent=5 // pred_check
      _
    $region38: #{detection_losses.1} parent=5 // pred_check_branch
      %256 = sbr.rel (%p253) target = $region40
    $region39: #{detection_losses.1} parent=5 // pred_region
      %s257 = ssub.s32 %s11, 1
      %p258 = scmp.lt.s32.totalorder %s20, 1
      %s259 = scalar_select %p258, %s20, 1
      %s260 = smul.addr %s259, 8
      %s261 = scalar_lea.vmem %s0, %s260
      %p262 = pneg %p49
      %p263 = pneg %p46
      %p264 = scmp.lt.s32.totalorder %s20, 1
      %s265 = scalar_select %p264, %s20, 1
      %s266 = smul.addr %s265, 8
      %s267 = scalar_lea.vmem %s1, %s266
      %p268 = pneg %p75
      %p269 = pneg %p72
      %p270 = scmp.lt.s32.totalorder %s20, 1
      %s271 = scalar_select %p270, %s20, 1
      %p272 = scmp.lt.s32.totalorder %s21, 0
      %s273 = scalar_select %p272, %s21, 0
      %s274 = sadd.s32 %s273, %s271
      %s275 = smul.addr %s274, 4
      %s276 = scalar_lea.vmem %s2, %s275
      %p277 = pneg %p103
      %p278 = pneg %p100
      %p279 = scmp.lt.s32.totalorder %s20, 1
      %s280 = scalar_select %p279, %s20, 1
      %p281 = scmp.lt.s32.totalorder %s21, 0
      %s282 = scalar_select %p281, %s21, 0
      %s283 = sadd.s32 %s282, %s280
      %s284 = smul.addr %s283, 4
      %s285 = scalar_lea.vmem %s3, %s284
      %p286 = pneg %p131
      %p287 = pneg %p128
      %p288 = scmp.lt.s32.totalorder %s20, 1
      %s289 = scalar_select %p288, %s20, 1
      %p290 = scmp.lt.s32.totalorder %s21, 0
      %s291 = scalar_select %p290, %s21, 0
      %s292 = smul.addr %s289, 4
      %s293 = sadd.s32 %s291, %s292
      %s294 = smul.addr %s293, 8
      %s295 = scalar_lea.vmem %s4, %s294
      %p296 = pneg %p159
      %p297 = pneg %p156
      %p298 = pneg %p187
      %p299 = pneg %p184
      %p300 = scmp.lt.s32.totalorder %s20, 1
      %s301 = scalar_select %p300, %s20, 1
      %p302 = scmp.lt.s32.totalorder %s21, 0
      %s303 = scalar_select %p302, %s21, 0
      %s304 = sadd.s32 %s303, %s301
      %s305 = smul.addr %s304, 4
      %s306 = scalar_lea.vmem %s5, %s305
      %p307 = scmp.lt.s32.totalorder %s20, 1
      %s308 = scalar_select %p307, %s20, 1
      %s309 = smul.addr %s308, 8
      %s310 = scalar_lea.vmem %s0, %s309
      %p311 = scmp.lt.s32.totalorder %s20, 1
      %s312 = scalar_select %p311, %s20, 1
      %s313 = smul.addr %s312, 8
      %s314 = scalar_lea.vmem %s1, %s313
      %p315 = scmp.lt.s32.totalorder %s20, 1
      %s316 = scalar_select %p315, %s20, 1
      %p317 = scmp.lt.s32.totalorder %s21, 0
      %s318 = scalar_select %p317, %s21, 0
      %s319 = sadd.s32 %s318, %s316
      %s320 = smul.addr %s319, 4
      %s321 = scalar_lea.vmem %s2, %s320
      %p322 = scmp.lt.s32.totalorder %s20, 1
      %s323 = scalar_select %p322, %s20, 1
      %p324 = scmp.lt.s32.totalorder %s21, 0
      %s325 = scalar_select %p324, %s21, 0
      %s326 = sadd.s32 %s325, %s323
      %s327 = smul.addr %s326, 4
      %s328 = scalar_lea.vmem %s3, %s327
      %p329 = scmp.lt.s32.totalorder %s20, 1
      %s330 = scalar_select %p329, %s20, 1
      %p331 = scmp.lt.s32.totalorder %s21, 0
      %s332 = scalar_select %p331, %s21, 0
      %s333 = smul.addr %s330, 4
      %s334 = sadd.s32 %s332, %s333
      %s335 = smul.addr %s334, 8
      %s336 = scalar_lea.vmem %s4, %s335
      %p337 = scmp.lt.s32.totalorder %s20, 1
      %s338 = scalar_select %p337, %s20, 1
      %p339 = scmp.lt.s32.totalorder %s21, 0
      %s340 = scalar_select %p339, %s21, 0
      %s341 = sadd.s32 %s340, %s338
      %s342 = smul.addr %s341, 4
      %s343 = scalar_lea.vmem %s5, %s342
      %v344 = vld [vmem:[%s310] sm:$0xff]
      %v345 = vld [vmem:[%s314] sm:$0xff]
      %v346 = vld [vmem:[%s321] sm:$0xf]
      %v347 = vld [vmem:[%s328] sm:$0xf]
      %v348 = vld [vmem:[%s336] sm:$0xff]
      %v349 = vld [vmem:[%s336 + $0x8] sm:$0xff]
      %v350 = vld [vmem:[%s336 + $0x10] sm:$0xff]
      %v351 = vld [vmem:[%s336 + $0x18] sm:$0xff]
      %353 = vset.pattern.permute.xlu0 0
      %354 = vperm.xlu0 %353, %v345
      %v355 = vpop.permute.xlu0 %354
      %v357 = vperm.slane %v346, 0
      %v358 = vsub.f32 %v355, %v357
      %v359 = vand.u32 2147483647, %v358
      %360 = vset.pattern.permute.xlu0 1
      %361 = vperm.xlu0 %360, %v345
      %v362 = vpop.permute.xlu0 %361
      %v364 = vperm.slane %v346, 1
      %v365 = vsub.f32 %v362, %v364
      %v366 = vand.u32 2147483647, %v365
      %v367 = vadd.f32 %v359, %v366
      %368 = vset.pattern.permute.xlu0 2
      %369 = vperm.xlu0 %368, %v345
      %v370 = vpop.permute.xlu0 %369
      %v372 = vperm.slane %v346, 2
      %v373 = vsub.f32 %v370, %v372
      %v374 = vand.u32 2147483647, %v373
      %v375 = vadd.f32 %v367, %v374
      %376 = vset.pattern.permute.xlu0 3
      %377 = vperm.xlu0 %376, %v345
      %v378 = vpop.permute.xlu0 %377
      %v380 = vperm.slane %v346, 3
      %v381 = vsub.f32 %v378, %v380
      %v382 = vand.u32 2147483647, %v381
      %v383 = vadd.f32 %v375, %v382
      %vm384 = vcmp.gt.f32.partialorder %v345, 0.5
      %v385 = vsel %vm384, 1, 0
      %386 = vset.pattern.permute.xlu0 4
      %387 = vperm.xlu0 %386, %v385
      %v388 = vpop.permute.xlu0 %387
      %vm389 = vcmp.eq.s32.totalorder %v388, 1
      %v390 = vsel %vm389, %v383, 1e+08
      %v391 = vlaneseq
      %v392 = vshrl.u32 %v391, 7
      %v393 = vcvt.s32.f32 %v392
      %vm394 = vcmask 130048
      %v395 = vsel %vm394, %v390, inf
      %v396 = vrot.slane %v395, 4
      %v397 = vmin.f32 %v395, %v396
      %v398 = vrot.slane %v397, 2
      %v399 = vmin.f32 %v397, %v398
      %v400 = vrot.slane %v399, 1
      %v401 = vmin.f32 %v399, %v400
      %vm402 = vcmp.eq.f32.partialorder %v390, %v401
      %v403 = vsel %vm402, %v393, 8.0
      %v404 = vsel %vm394, %v403, inf
      %v405 = vrot.slane %v404, 4
      %v406 = vmin.f32 %v404, %v405
      %v407 = vrot.slane %v406, 2
      %v408 = vmin.f32 %v406, %v407
      %v409 = vrot.slane %v408, 1
      %v410 = vmin.f32 %v408, %v409
      %vm411 = vcmp.eq.f32.partialorder %v393, %v410
      %v412 = vsel %vm411, 1, 0
      %v413 = vcvt.s32.f32 %v412
      %vm414 = vcmask 64512
      %v416 = vsel %vm414, %v344, 0
      %418 = vmatpush.msra.mxu0 0.0
      %419 = vmatpush.msra.mxu0 0.0
      %420 = vmatpush.msra.mxu0 0.0
      %421 = vmatpush.msra.mxu0 0.0
      %422 = vmatpush.msra.mxu0 0.0
      %423 = vmatpush.msra.mxu0 0.0
      %424 = vmatpush.msra.mxu0 0.0
      %425 = vmatpush.msra.mxu0 0.0
      %426 = vmatpush.msra.mxu0 0.0
      %427 = vmatpush.msra.mxu0 0.0
      %428 = vmatpush.msra.mxu0 0.0
      %429 = vmatpush.msra.mxu0 0.0
      %430 = vmatpush.msra.mxu0 0.0
      %431 = vmatpush.msra.mxu0 0.0
      %432 = vmatpush.msra.mxu0 0.0
      %v433 = vand.u32 %v413, 4294901760
      %434 = vmatpush.msra.mxu0 %v433
      %v435 = vand.u32 %v416, 4294901760
      %v436 = vsub.f32 %v416, %v435
      %v437 = vand.u32 %v436, 4294901760
      %v438 = vsub.f32 %v436, %v437
      %v439 = vand.u32 %v438, 4294901760
      %440 = vmatmul.f32.gmra.mxu0 %v439
      %v441 = vpop.f32.mrf.mxu0
      %v442 = vadd.f32 0.0, %v441
      %443 = vdwg.mxu0
      %444 = vmatpush.msra.mxu0 0.0
      %445 = vmatpush.msra.mxu0 0.0
      %446 = vmatpush.msra.mxu0 0.0
      %447 = vmatpush.msra.mxu0 0.0
      %448 = vmatpush.msra.mxu0 0.0
      %449 = vmatpush.msra.mxu0 0.0
      %450 = vmatpush.msra.mxu0 0.0
      %451 = vmatpush.msra.mxu0 0.0
      %452 = vmatpush.msra.mxu0 0.0
      %453 = vmatpush.msra.mxu0 0.0
      %454 = vmatpush.msra.mxu0 0.0
      %455 = vmatpush.msra.mxu0 0.0
      %456 = vmatpush.msra.mxu0 0.0
      %457 = vmatpush.msra.mxu0 0.0
      %458 = vmatpush.msra.mxu0 0.0
      %v459 = vand.u32 %v413, 4294901760
      %v460 = vsub.f32 %v413, %v459
      %v461 = vand.u32 %v460, 4294901760
      %v462 = vsub.f32 %v460, %v461
      %v463 = vand.u32 %v462, 4294901760
      %464 = vmatpush.msra.mxu0 %v463
      %v465 = vand.u32 %v416, 4294901760
      %466 = vmatmul.f32.gmra.mxu0 %v465
      %v467 = vpop.f32.mrf.mxu0
      %v468 = vadd.f32 %v442, %v467
      %469 = vdwg.mxu0
      %470 = vmatpush.msra.mxu0 0.0
      %471 = vmatpush.msra.mxu0 0.0
      %472 = vmatpush.msra.mxu0 0.0
      %473 = vmatpush.msra.mxu0 0.0
      %474 = vmatpush.msra.mxu0 0.0
      %475 = vmatpush.msra.mxu0 0.0
      %476 = vmatpush.msra.mxu0 0.0
      %477 = vmatpush.msra.mxu0 0.0
      %478 = vmatpush.msra.mxu0 0.0
      %479 = vmatpush.msra.mxu0 0.0
      %480 = vmatpush.msra.mxu0 0.0
      %481 = vmatpush.msra.mxu0 0.0
      %482 = vmatpush.msra.mxu0 0.0
      %483 = vmatpush.msra.mxu0 0.0
      %484 = vmatpush.msra.mxu0 0.0
      %v485 = vand.u32 %v413, 4294901760
      %v486 = vsub.f32 %v413, %v485
      %487 = vmatpush.msra.mxu0 %v486
      %v488 = vand.u32 %v416, 4294901760
      %v489 = vsub.f32 %v416, %v488
      %490 = vmatmul.f32.gmra.mxu0 %v489
      %v491 = vpop.f32.mrf.mxu0
      %v492 = vadd.f32 %v468, %v491
      %493 = vdwg.mxu0
      %494 = vmatpush.msra.mxu0 0.0
      %495 = vmatpush.msra.mxu0 0.0
      %496 = vmatpush.msra.mxu0 0.0
      %497 = vmatpush.msra.mxu0 0.0
      %498 = vmatpush.msra.mxu0 0.0
      %499 = vmatpush.msra.mxu0 0.0
      %500 = vmatpush.msra.mxu0 0.0
      %501 = vmatpush.msra.mxu0 0.0
      %502 = vmatpush.msra.mxu0 0.0
      %503 = vmatpush.msra.mxu0 0.0
      %504 = vmatpush.msra.mxu0 0.0
      %505 = vmatpush.msra.mxu0 0.0
      %506 = vmatpush.msra.mxu0 0.0
      %507 = vmatpush.msra.mxu0 0.0
      %508 = vmatpush.msra.mxu0 0.0
      %v509 = vand.u32 %v413, 4294901760
      %510 = vmatpush.msra.mxu0 %v509
      %v511 = vand.u32 %v416, 4294901760
      %v512 = vsub.f32 %v416, %v511
      %v513 = vand.u32 %v512, 4294901760
      %514 = vmatmul.f32.gmra.mxu0 %v513
      %v515 = vpop.f32.mrf.mxu0
      %v516 = vadd.f32 %v492, %v515
      %517 = vdwg.mxu0
      %518 = vmatpush.msra.mxu0 0.0
      %519 = vmatpush.msra.mxu0 0.0
      %520 = vmatpush.msra.mxu0 0.0
      %521 = vmatpush.msra.mxu0 0.0
      %522 = vmatpush.msra.mxu0 0.0
      %523 = vmatpush.msra.mxu0 0.0
      %524 = vmatpush.msra.mxu0 0.0
      %525 = vmatpush.msra.mxu0 0.0
      %526 = vmatpush.msra.mxu0 0.0
      %527 = vmatpush.msra.mxu0 0.0
      %528 = vmatpush.msra.mxu0 0.0
      %529 = vmatpush.msra.mxu0 0.0
      %530 = vmatpush.msra.mxu0 0.0
      %531 = vmatpush.msra.mxu0 0.0
      %532 = vmatpush.msra.mxu0 0.0
      %v533 = vand.u32 %v413, 4294901760
      %v534 = vsub.f32 %v413, %v533
      %v535 = vand.u32 %v534, 4294901760
      %536 = vmatpush.msra.mxu0 %v535
      %v537 = vand.u32 %v416, 4294901760
      %538 = vmatmul.f32.gmra.mxu0 %v537
      %v539 = vpop.f32.mrf.mxu0
      %v540 = vadd.f32 %v516, %v539
      %541 = vdwg.mxu0
      %542 = vmatpush.msra.mxu0 0.0
      %543 = vmatpush.msra.mxu0 0.0
      %544 = vmatpush.msra.mxu0 0.0
      %545 = vmatpush.msra.mxu0 0.0
      %546 = vmatpush.msra.mxu0 0.0
      %547 = vmatpush.msra.mxu0 0.0
      %548 = vmatpush.msra.mxu0 0.0
      %549 = vmatpush.msra.mxu0 0.0
      %550 = vmatpush.msra.mxu0 0.0
      %551 = vmatpush.msra.mxu0 0.0
      %552 = vmatpush.msra.mxu0 0.0
      %553 = vmatpush.msra.mxu0 0.0
      %554 = vmatpush.msra.mxu0 0.0
      %555 = vmatpush.msra.mxu0 0.0
      %556 = vmatpush.msra.mxu0 0.0
      %v557 = vand.u32 %v413, 4294901760
      %558 = vmatpush.msra.mxu0 %v557
      %v559 = vand.u32 %v416, 4294901760
      %560 = vmatmul.f32.gmra.mxu0 %v559
      %v561 = vpop.f32.mrf.mxu0
      %v562 = vadd.f32 %v540, %v561
      %563 = vdwg.mxu0
      %vm564 = vcmp.gt.f32.partialorder %v562, 0.5
      %v565 = vsub.f32 %v347, %v562
      %v566 = vand.u32 2147483647, %v565
      %v568 = vrot.slane %v566, 1
      %v570 = vadd.f32 %v566, %v568
      %v571 = vrot.slane %v566, 2
      %v573 = vadd.f32 %v570, %v571
      %v574 = vrot.slane %v566, 3
      %v576 = vadd.f32 %v573, %v574
      %v578 = vrot.slane %v576, 4
      %v580 = vsel %vm564, %v578, 0.0
      %v581 = vmul.f32 %v580, 5.0
      %v583 = vrot.slane %v347, 6
      %v585 = vsub.f32 %v347, %v583
      %v587 = vrot.slane %v585, 1
      %v589 = vmul.f32 %v585, %v587
      %v591 = vrot.slane %v562, 6
      %v593 = vsub.f32 %v562, %v591
      %v595 = vrot.slane %v593, 1
      %v597 = vmul.f32 %v593, %v595
      %v598 = vmin.f32 %v347, %v562
      %v599 = vmax.f32 %v347, %v562
      %v601 = vrot.slane %v599, 6
      %v603 = vsub.f32 %v598, %v601
      %v604 = vmax.f32 %v603, 0.0
      %v606 = vrot.slane %v604, 1
      %v608 = vmul.f32 %v604, %v606
      %v609 = vadd.f32 %v589, %v597
      %v610 = vsub.f32 %v609, %v608
      %v612 = vrot.slane %v598, 6
      %v614 = vsub.f32 %v599, %v612
      %v615 = vmax.f32 %v614, 0.0
      %v617 = vrot.slane %v615, 1
      %v619 = vmul.f32 %v615, %v617
      %v621 = vrot.slane %v610, 6
      %v623 = vsel %vm564, %v621, 1.0
      %v625 = vrot.slane %v623, 2
      %v627 = vrcp.pop %v625
      %v628 = vmul.f32 %v625, %v627
      %v629 = vsub.f32 1.0, %v628
      %v630 = vmul.f32 %v627, %v629
      %v631 = vadd.f32 %v627, %v630
      %vm632 = vweird.f32 %v625
      %vm633 = vweird.f32 %v627
      %vm634 = vmor %vm632, %vm633
      %v635 = vsel %vm634, %v627, %v631
      %v636 = vand.u32 2147483647, %v625
      %vm637 = vcmp.eq.f32.partialorder %v636, 8.507059e+37
      %v638 = vand.u32 %v625, 2147483648
      %v639 = vor.u32 1.1754944e-38, %v638
      %v640 = vsel %vm637, %v639, %v635
      %v641 = vmul.f32 %v608, %v640
      %v642 = vsub.f32 %v619, %v610
      %v644 = vrot.slane %v619, 6
      %v646 = vsel %vm564, %v644, 1.0
      %v648 = vrot.slane %v646, 2
      %v650 = vrcp.pop %v648
      %v651 = vmul.f32 %v648, %v650
      %v652 = vsub.f32 1.0, %v651
      %v653 = vmul.f32 %v650, %v652
      %v654 = vadd.f32 %v650, %v653
      %vm655 = vweird.f32 %v648
      %vm656 = vweird.f32 %v650
      %vm657 = vmor %vm655, %vm656
      %v658 = vsel %vm657, %v650, %v654
      %v659 = vand.u32 2147483647, %v648
      %vm660 = vcmp.eq.f32.partialorder %v659, 8.507059e+37
      %v661 = vand.u32 %v648, 2147483648
      %v662 = vor.u32 1.1754944e-38, %v661
      %v663 = vsel %vm660, %v662, %v658
      %v664 = vmul.f32 %v642, %v663
      %v665 = vsub.f32 %v641, %v664
      %v667 = vrot.slane %v665, 6
      %v669 = vsel %vm564, %v667, 1e+08
      %v670 = vadd.s32 %v392, 8
      %v671 = vadd.s32 %v392, 16
      %v672 = vadd.s32 %v392, 24
      %v673 = vcvt.s32.f32 %v670
      %v674 = vcvt.s32.f32 %v671
      %v675 = vcvt.s32.f32 %v672
      %v676 = vperm.slane %v562, 6
      %v677 = vsub.f32 %v393, %v676
      %v678 = vsub.f32 %v673, %v676
      %v679 = vsub.f32 %v674, %v676
      %v680 = vsub.f32 %v675, %v676
      %v681 = vand.u32 2147483647, %v677
      %v682 = vand.u32 2147483647, %v678
      %v683 = vand.u32 2147483647, %v679
      %v684 = vand.u32 2147483647, %v680
      %vm685 = vcmp.lt.f32.partialorder %v681, 0.5
      %vm686 = vcmp.lt.f32.partialorder %v682, 0.5
      %vm687 = vcmp.lt.f32.partialorder %v683, 0.5
      %vm688 = vcmp.lt.f32.partialorder %v684, 0.5
      %v689 = vsel %vm685, 1, 0
      %v690 = vsel %vm686, 1, 0
      %v691 = vsel %vm687, 1, 0
      %v692 = vsel %vm688, 1, 0
      %v693 = vcvt.s32.f32 %v689
      %v694 = vcvt.s32.f32 %v690
      %v695 = vcvt.s32.f32 %v691
      %v696 = vcvt.s32.f32 %v692
      %v697 = vand.u32 2147483647, %v348
      %v698 = vand.u32 2147483647, %v349
      %v699 = vand.u32 2147483647, %v350
      %v700 = vand.u32 2147483647, %v351
      %v701 = vsub.f32 0.0, %v697
      %v702 = vsub.f32 0.0, %v698
      %v703 = vsub.f32 0.0, %v699
      %v704 = vsub.f32 0.0, %v700
      %v705 = vmul.f32 %v701, 1.442695
      %v706 = vpow.pop %v705
      %v707 = vmul.f32 %v702, 1.442695
      %v708 = vpow.pop %v707
      %v709 = vmul.f32 %v703, 1.442695
      %v710 = vpow.pop %v709
      %v711 = vmul.f32 %v704, 1.442695
      %v712 = vpow.pop %v711
      %v713 = vmax.f32 %v348, 0.0
      %v714 = vmax.f32 %v349, 0.0
      %v715 = vmax.f32 %v350, 0.0
      %v716 = vmax.f32 %v351, 0.0
      %v717 = vadd.f32 %v706, 1.0
      %v718 = vadd.f32 %v708, 1.0
      %v719 = vadd.f32 %v710, 1.0
      %v720 = vadd.f32 %v712, 1.0
      %v721 = vlog2.pop %v717
      %v722 = vmul.f32 %v721, 0.6931472
      %v723 = vlog2.pop %v718
      %v724 = vmul.f32 %v723, 0.6931472
      %v725 = vlog2.pop %v719
      %v726 = vmul.f32 %v725, 0.6931472
      %v727 = vlog2.pop %v720
      %v728 = vmul.f32 %v727, 0.6931472
      %v729 = vadd.f32 %v713, %v722
      %v730 = vadd.f32 %v714, %v724
      %v731 = vadd.f32 %v715, %v726
      %v732 = vadd.f32 %v716, %v728
      %v733 = vmul.f32 %v693, %v348
      %v734 = vmul.f32 %v694, %v349
      %v735 = vmul.f32 %v695, %v350
      %v736 = vmul.f32 %v696, %v351
      %v737 = vsub.f32 %v729, %v733
      %v738 = vsub.f32 %v730, %v734
      %v739 = vsub.f32 %v731, %v735
      %v740 = vsub.f32 %v732, %v736
      %v741 = vrcp.pop %v717
      %v742 = vrcp.pop %v718
      %v743 = vrcp.pop %v719
      %v744 = vrcp.pop %v720
      %v745 = vmul.f32 %v717, %v741
      %v746 = vmul.f32 %v718, %v742
      %v747 = vmul.f32 %v719, %v743
      %v748 = vmul.f32 %v720, %v744
      %v749 = vsub.f32 2.0, %v745
      %v750 = vsub.f32 2.0, %v746
      %v751 = vsub.f32 2.0, %v747
      %v752 = vsub.f32 2.0, %v748
      %v753 = vmul.f32 %v741, %v749
      %v754 = vmul.f32 %v742, %v750
      %v755 = vmul.f32 %v743, %v751
      %v756 = vmul.f32 %v744, %v752
      %vm757 = vcmp.ge.f32.partialorder %v348, 0.0
      %vm758 = vcmp.ge.f32.partialorder %v349, 0.0
      %vm759 = vcmp.ge.f32.partialorder %v350, 0.0
      %vm760 = vcmp.ge.f32.partialorder %v351, 0.0
      %v761 = vsub.f32 1.0, %v753
      %v762 = vsub.f32 1.0, %v754
      %v763 = vsub.f32 1.0, %v755
      %v764 = vsub.f32 1.0, %v756
      %v765 = vsel %vm757, %v753, %v761
      %v766 = vsel %vm758, %v754, %v762
      %v767 = vsel %vm759, %v755, %v763
      %v768 = vsel %vm760, %v756, %v764
      %v769 = vmul.f32 %v693, 2.0
      %v770 = vmul.f32 %v694, 2.0
      %v771 = vmul.f32 %v695, 2.0
      %v772 = vmul.f32 %v696, 2.0
      %v773 = vsub.f32 1.0, %v769
      %v774 = vsub.f32 1.0, %v770
      %v775 = vsub.f32 1.0, %v771
      %v776 = vsub.f32 1.0, %v772
      %v777 = vmul.f32 %v773, %v765
      %v778 = vmul.f32 %v774, %v766
      %v779 = vmul.f32 %v775, %v767
      %v780 = vmul.f32 %v776, %v768
      %v781 = vadd.f32 %v693, %v777
      %v782 = vadd.f32 %v694, %v778
      %v783 = vadd.f32 %v695, %v779
      %v784 = vadd.f32 %v696, %v780
      %v785 = vmul.f32 %v693, -0.5
      %v786 = vmul.f32 %v694, -0.5
      %v787 = vmul.f32 %v695, -0.5
      %v788 = vmul.f32 %v696, -0.5
      %v789 = vadd.f32 %v785, 0.75
      %v790 = vadd.f32 %v786, 0.75
      %v791 = vadd.f32 %v787, 0.75
      %v792 = vadd.f32 %v788, 0.75
      %v793 = vmul.f32 %v789, %v737
      %v794 = vmul.f32 %v790, %v738
      %v795 = vmul.f32 %v791, %v739
      %v796 = vmul.f32 %v792, %v740
      %v797 = vmul.f32 %v793, %v781
      %v798 = vmul.f32 %v794, %v782
      %v799 = vmul.f32 %v795, %v783
      %v800 = vmul.f32 %v796, %v784
      %v801 = vmul.f32 %v797, %v781
      %v802 = vmul.f32 %v798, %v782
      %v803 = vmul.f32 %v799, %v783
      %v804 = vmul.f32 %v800, %v784
      %v805 = vsel %vm394, %v801, 0.0
      %v806 = vsel %vm394, %v802, 0.0
      %v807 = vadd.f32 %v805, %v806
      %v808 = vsel %vm394, %v803, 0.0
      %v809 = vadd.f32 %v807, %v808
      %v810 = vsel %vm394, %v804, 0.0
      %v811 = vadd.f32 %v809, %v810
      %v812 = vrot.slane %v811, 4
      %v813 = vadd.f32 %v811, %v812
      %v814 = vrot.slane %v813, 2
      %v815 = vadd.f32 %v813, %v814
      %v816 = vrot.slane %v815, 1
      %v817 = vadd.f32 %v815, %v816
      %v818 = vrcp.pop 32.0
      %v819 = vmul.f32 32.0, %v818
      %v820 = vsub.f32 1.0, %v819
      %v821 = vmul.f32 %v818, %v820
      %v822 = vadd.f32 %v818, %v821
      %vm823 = vweird.f32 %v818
      %v824 = vsel %vm823, %v818, %v822
      %v825 = vmul.f32 %v817, %v824
      %v826 = vsel %vm564, %v825, 0.0
      %v827 = vmul.f32 %v826, 2.0
      %v829 = vrot.slane %v827, 5
      %v832 = vrot.slane %v581, 3
      %v835 = vrot.slane %v669, 2
      %vm837 = vcmask 1040384
      %v838 = vsel %vm837, %v829, %v832
      %vm839 = vcmask 1041408
      %v840 = vsel %vm839, %v838, %v835
      %vm841 = vcmask 124928
      %842 = vst.msk [vmem:[%s343] sm:$0x7] %vm841, %v840
      %p843 = scmp.lt.s32.totalorder %s20, 1
      %s844 = scalar_select %p843, %s20, 1
      %p845 = scmp.lt.s32.totalorder %s21, 0
      %s846 = scalar_select %p845, %s21, 0
      %s847 = sadd.s32 %s846, %s844
      %s848 = smul.addr %s847, 4
      %s849 = scalar_lea.vmem %s5, %s848
      // Predicated region
      $region41: #{detection_losses.1} parent=39 // pred_check
        %p850 = pneg %p184
      $region42: #{detection_losses.1} parent=39 // pred_check_branch
        %852 = sbr.rel (%p850) target = $region44
      $region43: #{detection_losses.1} parent=39 // pred_region
        _
      $region44: #{detection_losses.1} parent=39 // pred_fallthru
        _
    $region40: #{detection_losses.1} parent=5 // pred_fallthru
      _
    %p853 = scmp.le.s32.totalorder 2, %s11
    // Predicated region
    $region45: #{detection_losses.1} parent=5 // pred_check
      %p854 = pneg %p853
    $region46: #{detection_losses.1} parent=5 // pred_check_branch
      %856 = sbr.rel (%p854) target = $region48
    $region47: #{detection_losses.1} parent=5 // pred_region
      %s857 = ssub.s32 %s11, 2
      // Predicated region
      $region49: #{detection_losses.1} parent=47 // pred_check
        %p858 = pneg %p190
      $region50: #{detection_losses.1} parent=47 // pred_check_branch
        %860 = sbr.rel (%p858) target = $region52
      $region51: #{detection_losses.1} parent=47 // pred_region
        %p861 = scmp.lt.s32.totalorder %s22, 1
        %s862 = scalar_select %p861, %s22, 1
        %p863 = scmp.lt.s32.totalorder %s23, 0
        %s864 = scalar_select %p863, %s23, 0
        %s865 = sadd.s32 %s864, %s862
        %s866 = smul.addr %s865, 4
        %s867 = scalar_lea.vmem %s5, %s866
      $region52: #{detection_losses.1} parent=47 // pred_fallthru
        _
    $region48: #{detection_losses.1} parent=5 // pred_fallthru
      _
  $region6: #{detection_losses.1} parent=0 // loop_footer
    %s15 = sadd.s32 1, %s11
  $region7: #{detection_losses.1} parent=0 // loop_footer_branch
    %10 = sbr.rel target = $region3
  $region8: #{detection_losses.1} parent=0 // loop_exit
    _

</llo_original>
